<compile_context>
chip_gen: v5e
topology: v5e:2x2
jax: 0.10.0
libtpu: 0.0.40
codegen_flags: <defaults>
</compile_context>

<pallas_src>
import math

import jax
import jax.numpy as jnp
from jax.experimental import pallas as pl
from jax.experimental.pallas import tpu as pltpu


LANE = 128            # TPU lane width (last-dim granularity)
BATCH_ALIGN = 16      # sublane-clean tile granularity for both f32 and bf16
MAX_BATCH_TILE = 1024 # rows of activations per grid step (sweep 512/1024/2048)


def _round_up(n: int, m: int) -> int:
    return ((n + m - 1) // m) * m


def _fused_linear_kernel(x_ref, w_ref, b_ref, o_ref):
    # x_ref: (TB, D_pad)     bf16 (or f32 -> cast on the VPU below)
    # w_ref: (D_pad, O_pad)  bf16  -- pre-fused, pre-transposed (K, N) weight
    # b_ref: (1, O_pad)      f32   -- pre-fused bias
    # o_ref: (TB, O_pad)     f32
    x = x_ref[...]
    if x.dtype != jnp.bfloat16:        # static (trace-time) branch
        x = x.astype(jnp.bfloat16)     # VPU cast; free under a memory-bound kernel
    acc = jnp.dot(x, w_ref[...], preferred_element_type=jnp.float32)
    o_ref[...] = (acc + b_ref[...]).astype(o_ref.dtype)


def fashion_mnist_model_v0(x_nchw, w1, b1, w2, b2, *, cast_activations=True):
    """Forward pass of FashionMNISTModelV0 (Flatten -> Linear -> Linear).

    x_nchw: (B, C, H, W)
    w1: (hidden, D), b1: (hidden,)   -- nn.Linear (out_features, in_features) convention
    w2: (out, hidden), b2: (out,)
    returns: (B, out) float32
    """
    B = x_nchw.shape[0]
    D = math.prod(x_nchw.shape[1:])          # static Python int
    hidden = w1.shape[0]
    out_features = w2.shape[0]
    assert w1.shape == (hidden, D) and w2.shape == (out_features, hidden)

    D_pad = _round_up(D, LANE)
    O_pad = _round_up(out_features, LANE)

    # ---- batch tiling ------------------------------------------------------
    if B < 2 * BATCH_ALIGN:
        # Tiny batch: pad to one aligned tile (copy cost negligible at this size).
        B_pad = _round_up(B, BATCH_ALIGN)
        TB = B_pad
    else:
        # Large batch: NO padding copy of x.  grid = cdiv(B, TB); the ragged last
        # tile's out-of-bounds rows are masked on the output store, and each output
        # row depends only on its own input row, so correctness is unaffected.
        B_pad = B
        TB = min(MAX_BATCH_TILE, _round_up(pl.cdiv(B, 2), BATCH_ALIGN))
    grid = (pl.cdiv(B_pad, TB),)

    # ---- nn.Flatten (bitcast) + activation dtype / padding ------------------
    x2d = x_nchw.reshape(B, D)
    if cast_activations and x2d.dtype == jnp.float32:
        # Halves the dominant HBM stream on v5e/v6e.  Under an end-to-end jit this
        # convert fuses with the producer of x; standalone it costs one extra pass,
        # in which case pass cast_activations=False (kernel casts on the VPU).
        x2d = x2d.astype(jnp.bfloat16)
    pad_rows, pad_cols = B_pad - B, D_pad - D
    if pad_rows or pad_cols:
        x2d = jnp.pad(x2d, ((0, pad_rows), (0, pad_cols)))

    # ---- fold the two Linear layers (no nonlinearity in between) ------------
    # In a real deployment fold once at parameter-load time, not per forward.
    w1t = w1.astype(jnp.float32).T            # (D, hidden)
    w2t = w2.astype(jnp.float32).T            # (hidden, out)
    w_fused = jnp.pad(w1t @ w2t, ((0, D_pad - D), (0, O_pad - out_features)))
    w_fused = w_fused.astype(jnp.bfloat16)    # (D_pad, O_pad), zero-padded lanes
    b_fused = b1.astype(jnp.float32) @ w2t + b2.astype(jnp.float32)
    b_fused = jnp.pad(b_fused, (0, O_pad - out_features)).reshape(1, O_pad)  # f32

    # Advisory scheduling hint only (it does NOT overlap producers with the call).
    cost = pl.CostEstimate(
        flops=2 * B_pad * D_pad * O_pad + B_pad * O_pad,
        transcendentals=0,
        bytes_accessed=(x2d.size * x2d.dtype.itemsize
                        + w_fused.size * 2 + b_fused.size * 4
                        + B_pad * O_pad * 4))

    out_p = pl.pallas_call(
        _fused_linear_kernel,
        out_shape=jax.ShapeDtypeStruct((B_pad, O_pad), jnp.float32),
        grid_spec=pltpu.PrefetchScalarGridSpec(
            num_scalar_prefetch=0,
            grid=grid,
            in_specs=[
                # activations: tiled over batch -> double-buffered / pipelined DMA
                pl.BlockSpec((TB, D_pad), lambda i: (i, 0)),
                # fused weight / bias: same block every step -> stay VMEM-resident
                pl.BlockSpec((D_pad, O_pad), lambda i: (0, 0)),
                pl.BlockSpec((1, O_pad), lambda i: (0, 0)),
            ],
            out_specs=pl.BlockSpec((TB, O_pad), lambda i: (i, 0)),
        ),
        compiler_params=pltpu.CompilerParams(
            # independent batch tiles -> shardable across TensorCores (v7x megacore)
            dimension_semantics=("parallel",),
        ),
        cost_estimate=cost,
    )(x2d, w_fused, b_fused)

    # Slice away batch / lane padding (padded weight/bias lanes are zero anyway).
    return out_p[:B, :out_features]


if __name__ == "__main__":
    # Small shapes consistent with the module: batch=2, 1x16x16 "images"
    # -> input_shape = 256, hidden_units = 32, output_shape = 10.
    B, C, H, W = 2, 1, 16, 16
    D = C * H * W
    HIDDEN = 32
    OUT = 10

    key = jax.random.PRNGKey(0)
    kx, k1, k2, k3, k4 = jax.random.split(key, 5)

    x = jax.random.normal(kx, (B, C, H, W), dtype=jnp.float32)

    # Deterministic parameter init (mimics nn.Linear uniform(-1/sqrt(fan_in), 1/sqrt(fan_in)))
    bound1 = 1.0 / (D ** 0.5)
    w1 = jax.random.uniform(k1, (HIDDEN, D), jnp.float32, -bound1, bound1)
    b1 = jax.random.uniform(k2, (HIDDEN,), jnp.float32, -bound1, bound1)
    bound2 = 1.0 / (HIDDEN ** 0.5)
    w2 = jax.random.uniform(k3, (OUT, HIDDEN), jnp.float32, -bound2, bound2)
    b2 = jax.random.uniform(k4, (OUT,), jnp.float32, -bound2, bound2)

    fwd = jax.jit(fashion_mnist_model_v0)
    out = jax.block_until_ready(fwd(x, w1, b1, w2, b2))
    assert out.shape == (B, OUT)

    x_flat = x.reshape(B, D)

    # Tight check against a bf16-consistent reference (same folding, same input rounding).
    w_fused_ref = w1.T @ w2.T
    b_fused_ref = b1 @ w2.T + b2
    ref_bf16 = (x_flat.astype(jnp.bfloat16).astype(jnp.float32)
                @ w_fused_ref.astype(jnp.bfloat16).astype(jnp.float32) + b_fused_ref)
    assert jnp.allclose(out, ref_bf16, atol=1e-3, rtol=1e-3)

    # Looser check against the full-f32 PyTorch-style reference (two separate Linears).
    ref_f32 = (x_flat @ w1.T + b1) @ w2.T + b2
    assert jnp.allclose(out, ref_f32, atol=3e-2, rtol=3e-2)

    print("KERNEL_OK")
</pallas_src>

<mosaic_0001>
module attributes {stable_mosaic.version = 11 : i64} {
  func.func @_fused_linear_kernel(%arg0: i32, %arg1: memref<16x256xbf16, #tpu.memory_space<vmem>>, %arg2: memref<256x128xbf16, #tpu.memory_space<vmem>>, %arg3: memref<1x128xf32, #tpu.memory_space<vmem>>, %arg4: memref<16x128xf32, #tpu.memory_space<vmem>>) attributes {dimension_semantics = [#tpu.dimension_semantics<parallel>], iteration_bounds = array<i64: 1>, scalar_prefetch = 0 : i64, scratch_operands = 0 : i64, tpu.core_type = #tpu.core_type<tc>, window_params = [{transform_indices = @transform_0, window_bounds = array<i64: 16, 256>}, {pipeline_mode = #tpu.pipeline_mode<synchronous>, transform_indices = @transform_1, window_bounds = array<i64: 256, 128>}, {pipeline_mode = #tpu.pipeline_mode<synchronous>, transform_indices = @transform_2, window_bounds = array<i64: 1, 128>}, {transform_indices = @transform_3, window_bounds = array<i64: 16, 128>}]} {
    %c0 = arith.constant 0 : index
    %c0_0 = arith.constant 0 : index
    %0 = vector.load %arg1[%c0, %c0_0] : memref<16x256xbf16, #tpu.memory_space<vmem>>, vector<16x256xbf16>
    %c0_1 = arith.constant 0 : index
    %c0_2 = arith.constant 0 : index
    %1 = vector.load %arg2[%c0_1, %c0_2] : memref<256x128xbf16, #tpu.memory_space<vmem>>, vector<256x128xbf16>
    %cst = arith.constant dense<0.000000e+00> : vector<16x128xf32>
    %2 = tpu.matmul %0, %1, %cst {dimension_numbers = #tpu.dot_dimension_numbers<[1], [0], [0], [1], [0, 0, 1, 1], [], []>} : vector<16x256xbf16>, vector<256x128xbf16>, vector<16x128xf32> -> vector<16x128xf32>
    %c0_3 = arith.constant 0 : index
    %c0_4 = arith.constant 0 : index
    %3 = vector.load %arg3[%c0_3, %c0_4] : memref<1x128xf32, #tpu.memory_space<vmem>>, vector<1x128xf32>
    %4 = vector.broadcast %3 : vector<1x128xf32> to vector<16x128xf32>
    %5 = arith.addf %2, %4 : vector<16x128xf32>
    %c0_5 = arith.constant 0 : index
    %c0_6 = arith.constant 0 : index
    %6 = vector.load %arg4[%c0_5, %c0_6] : memref<16x128xf32, #tpu.memory_space<vmem>>, vector<16x128xf32>
    tpu.vector_store %arg4[%c0_5, %c0_6], %5 {strides = array<i32>} : memref<16x128xf32, #tpu.memory_space<vmem>>, vector<16x128xf32>,
    return
  }
  func.func @transform_0(%arg0: i32) -> (i32, i32) {
    %c0_i32 = arith.constant 0 : i32
    %c0_i32_0 = arith.constant 0 : i32
    return %arg0, %c0_i32 : i32, i32
  }
  func.func @transform_1(%arg0: i32) -> (i32, i32) {
    %c0_i32 = arith.constant 0 : i32
    %c0_i32_0 = arith.constant 0 : i32
    %c0_i32_1 = arith.constant 0 : i32
    return %c0_i32, %c0_i32_0 : i32, i32
  }
  func.func @transform_2(%arg0: i32) -> (i32, i32) {
    %c0_i32 = arith.constant 0 : i32
    %c0_i32_0 = arith.constant 0 : i32
    %c0_i32_1 = arith.constant 0 : i32
    return %c0_i32, %c0_i32_0 : i32, i32
  }
  func.func @transform_3(%arg0: i32) -> (i32, i32) {
    %c0_i32 = arith.constant 0 : i32
    %c0_i32_0 = arith.constant 0 : i32
    return %arg0, %c0_i32 : i32, i32
  }
}

</mosaic_0001>

<llo_original>
// kernel: fashion_mnist_model_v0.1
$region0: #{fashion_mnist_model_v0.1}
  #allocation0 [shape = 'u32[]', space=smem, size = 0x4, offset = 0x4, fixed_abs, tag = 'smem constant byte address 0x4 - core index']
  #allocation1 [shape = 'u32[72,128]{1,0:T(1,128)}', space=vmem, size = 0x9000, scoped, tag = 'internal scratch']
  %s0 = inlined_call_operand.vmem [shape: bf16[16,256], index: 0, kind: input, shape index: {}]
  %s1 = inlined_call_operand.vmem [shape: bf16[256,128], index: 1, kind: input, shape index: {}]
  %s2 = inlined_call_operand.vmem [shape: f32[1,128], index: 2, kind: input, shape index: {}]
  %s3 = inlined_call_operand.vmem [shape: f32[16,128], index: 3, kind: output, shape index: {}]
  %s4 = sld [smem:[#allocation0]]
  $region22: #{fashion_mnist_model_v0.1} parent=0
    _
  %s6 = ssub.s32 1, %s4
  %s7 = scalar_select 0, %s6, %s4
  // Predicated region
  $region2: #{fashion_mnist_model_v0.1} parent=0 // pred_check
    _
  $region3: #{fashion_mnist_model_v0.1} parent=0 // pred_check_branch
    %9 = sbr.rel (0) target = $region5
  $region4: #{fashion_mnist_model_v0.1} parent=0 // pred_region
    _
  $region5: #{fashion_mnist_model_v0.1} parent=0 // pred_fallthru
    _
  // Predicated region
  $region6: #{fashion_mnist_model_v0.1} parent=0 // pred_check
    _
  $region7: #{fashion_mnist_model_v0.1} parent=0 // pred_check_branch
    %11 = sbr.rel (0) target = $region9
  $region8: #{fashion_mnist_model_v0.1} parent=0 // pred_region
    _
  $region9: #{fashion_mnist_model_v0.1} parent=0 // pred_fallthru
    _
  // Predicated region
  $region10: #{fashion_mnist_model_v0.1} parent=0 // pred_check
    _
  $region11: #{fashion_mnist_model_v0.1} parent=0 // pred_check_branch
    %13 = sbr.rel (0) target = $region13
  $region12: #{fashion_mnist_model_v0.1} parent=0 // pred_region
    _
  $region13: #{fashion_mnist_model_v0.1} parent=0 // pred_fallthru
    _
  %v14 = vld [vmem:[%s0] sm:$0xff]
  %v15 = vld [vmem:[%s0 + $0x8] sm:$0xff]
  %v16 = vld [vmem:[%s1] sm:$0xf]
  %v17 = vld [vmem:[%s1 + $0x4] sm:$0xf]
  %v18 = vld [vmem:[%s1 + $0x8] sm:$0xf]
  %v19 = vld [vmem:[%s1 + $0xc] sm:$0xf]
  %v20 = vld [vmem:[%s1 + $0x10] sm:$0xf]
  %v21 = vld [vmem:[%s1 + $0x14] sm:$0xf]
  %v22 = vld [vmem:[%s1 + $0x18] sm:$0xf]
  %v23 = vld [vmem:[%s1 + $0x1c] sm:$0xf]
  %v24 = vld [vmem:[%s1 + $0x20] sm:$0xf]
  %v25 = vld [vmem:[%s1 + $0x24] sm:$0xf]
  %v26 = vld [vmem:[%s1 + $0x28] sm:$0xf]
  %v27 = vld [vmem:[%s1 + $0x2c] sm:$0xf]
  %v28 = vld [vmem:[%s1 + $0x30] sm:$0xf]
  %v29 = vld [vmem:[%s1 + $0x34] sm:$0xf]
  %v30 = vld [vmem:[%s1 + $0x38] sm:$0xf]
  %v31 = vld [vmem:[%s1 + $0x3c] sm:$0xf]
  %v32 = vld [vmem:[%s1 + $0x40] sm:$0xf]
  %v33 = vld [vmem:[%s1 + $0x44] sm:$0xf]
  %v34 = vld [vmem:[%s1 + $0x48] sm:$0xf]
  %v35 = vld [vmem:[%s1 + $0x4c] sm:$0xf]
  %v36 = vld [vmem:[%s1 + $0x50] sm:$0xf]
  %v37 = vld [vmem:[%s1 + $0x54] sm:$0xf]
  %v38 = vld [vmem:[%s1 + $0x58] sm:$0xf]
  %v39 = vld [vmem:[%s1 + $0x5c] sm:$0xf]
  %v40 = vld [vmem:[%s1 + $0x60] sm:$0xf]
  %v41 = vld [vmem:[%s1 + $0x64] sm:$0xf]
  %v42 = vld [vmem:[%s1 + $0x68] sm:$0xf]
  %v43 = vld [vmem:[%s1 + $0x6c] sm:$0xf]
  %v44 = vld [vmem:[%s1 + $0x70] sm:$0xf]
  %v45 = vld [vmem:[%s1 + $0x74] sm:$0xf]
  %v46 = vld [vmem:[%s1 + $0x78] sm:$0xf]
  %v47 = vld [vmem:[%s1 + $0x7c] sm:$0xf]
  %v48 = vld [vmem:[%s2] sm:$0x1]
  %v50 = vperm.slane %v48, 0
  %v54 = vunpack.c.l.b16 %v14
  %v55 = vunpack.c.h.b16 %v14
  %v56 = vunpack.c.l.b16 %v15
  %v57 = vunpack.c.h.b16 %v15
  %v58 = vpack.c.b16 %v56, %v54
  %v59 = vpack.c.b16 %v57, %v55
  %v94 = vunpack.c.l.b16 %v16
  %v95 = vunpack.c.l.b16 %v17
  %v96 = vunpack.c.l.b16 %v18
  %v97 = vunpack.c.l.b16 %v19
  %v98 = vunpack.c.l.b16 %v20
  %v99 = vunpack.c.l.b16 %v21
  %v100 = vunpack.c.l.b16 %v22
  %v101 = vunpack.c.l.b16 %v23
  %v102 = vunpack.c.l.b16 %v24
  %v103 = vunpack.c.l.b16 %v25
  %v104 = vunpack.c.l.b16 %v26
  %v105 = vunpack.c.l.b16 %v27
  %v106 = vunpack.c.l.b16 %v28
  %v107 = vunpack.c.l.b16 %v29
  %v108 = vunpack.c.l.b16 %v30
  %v109 = vunpack.c.l.b16 %v31
  %v110 = vunpack.c.l.b16 %v32
  %v111 = vunpack.c.l.b16 %v33
  %v112 = vunpack.c.l.b16 %v34
  %v113 = vunpack.c.l.b16 %v35
  %v114 = vunpack.c.l.b16 %v36
  %v115 = vunpack.c.l.b16 %v37
  %v116 = vunpack.c.l.b16 %v38
  %v117 = vunpack.c.l.b16 %v39
  %v118 = vunpack.c.l.b16 %v40
  %v119 = vunpack.c.l.b16 %v41
  %v120 = vunpack.c.l.b16 %v42
  %v121 = vunpack.c.l.b16 %v43
  %v122 = vunpack.c.l.b16 %v44
  %v123 = vunpack.c.l.b16 %v45
  %v124 = vunpack.c.l.b16 %v46
  %v125 = vunpack.c.l.b16 %v47
  %v126 = vpack.c.b16 %v95, %v94
  %v127 = vpack.c.b16 %v97, %v96
  %v128 = vpack.c.b16 %v99, %v98
  %v129 = vpack.c.b16 %v101, %v100
  %v130 = vpack.c.b16 %v103, %v102
  %v131 = vpack.c.b16 %v105, %v104
  %v132 = vpack.c.b16 %v107, %v106
  %v133 = vpack.c.b16 %v109, %v108
  %v134 = vpack.c.b16 %v111, %v110
  %v135 = vpack.c.b16 %v113, %v112
  %v136 = vpack.c.b16 %v115, %v114
  %v137 = vpack.c.b16 %v117, %v116
  %v138 = vpack.c.b16 %v119, %v118
  %v139 = vpack.c.b16 %v121, %v120
  %v140 = vpack.c.b16 %v123, %v122
  %v141 = vpack.c.b16 %v125, %v124
  %158 = vmatpush.bf16.msra.mxu0 %v133
  %159 = vmatpush.bf16.msra.mxu0 %v132
  %160 = vmatpush.bf16.msra.mxu0 %v131
  %161 = vmatpush.bf16.msra.mxu0 %v130
  %162 = vmatpush.bf16.msra.mxu0 %v129
  %163 = vmatpush.bf16.msra.mxu0 %v128
  %164 = vmatpush.bf16.msra.mxu0 %v127
  %165 = vmatpush.bf16.msra.mxu0 %v126
  %166 = vmatmul.bf16.gmra.mxu0 %v58
  %v167 = vpop.f32.mrf.mxu0
  %v168 = vadd.f32 %v50, %v167
  %v169 = vpop.f32.mrf.mxu0
  %v170 = vadd.f32 %v50, %v169
  %171 = vdwg.mxu0
  %172 = vmatpush.bf16.msra.mxu0 %v141
  %173 = vmatpush.bf16.msra.mxu0 %v140
  %174 = vmatpush.bf16.msra.mxu0 %v139
  %175 = vmatpush.bf16.msra.mxu0 %v138
  %176 = vmatpush.bf16.msra.mxu0 %v137
  %177 = vmatpush.bf16.msra.mxu0 %v136
  %178 = vmatpush.bf16.msra.mxu0 %v135
  %179 = vmatpush.bf16.msra.mxu0 %v134
  %180 = vmatmul.bf16.gmra.mxu0 %v59
  %v181 = vpop.f32.mrf.mxu0
  %v182 = vadd.f32 %v168, %v181
  %v183 = vpop.f32.mrf.mxu0
  %v184 = vadd.f32 %v170, %v183
  %185 = vdwg.mxu0
  %186 = vst [vmem:[%s3] sm:$0xff] %v182
  %187 = vst [vmem:[%s3 + $0x8] sm:$0xff] %v184
  // Predicated region
  $region14: #{fashion_mnist_model_v0.1} parent=0 // pred_check
    _
  $region15: #{fashion_mnist_model_v0.1} parent=0 // pred_check_branch
    %189 = sbr.rel (0) target = $region17
  $region16: #{fashion_mnist_model_v0.1} parent=0 // pred_region
    _
  $region17: #{fashion_mnist_model_v0.1} parent=0 // pred_fallthru
    _
  // Predicated region
  $region18: #{fashion_mnist_model_v0.1} parent=0 // pred_check
    _
  $region19: #{fashion_mnist_model_v0.1} parent=0 // pred_check_branch
    %191 = sbr.rel (0) target = $region21
  $region20: #{fashion_mnist_model_v0.1} parent=0 // pred_region
    _
  $region21: #{fashion_mnist_model_v0.1} parent=0 // pred_fallthru
    _

</llo_original>
